<compile_context>
chip_gen: v6e
topology: v6e:2x2x1
jax: 0.10.0
libtpu: 0.0.40
codegen_flags: <defaults>
</compile_context>

<pallas_src>
import functools

import jax
import jax.numpy as jnp
from jax.experimental import pallas as pl
from jax.experimental.pallas import tpu as pltpu

EPS = 1e-5
LANE = 128
SUBLANE = 8


def _round_up(n, m):
    return ((n + m - 1) // m) * m


def _bn_swish(h, gamma, beta, n_rows, row_mask):
    """Training-mode BatchNorm1d (biased batch stats) folded into a single
    per-feature scale/shift, followed by Swish.  All math in f32."""
    inv_n = jnp.float32(1.0 / n_rows)
    if row_mask is None:
        mean = jnp.sum(h, axis=0, keepdims=True) * inv_n
        d = h - mean
    else:
        hm = jnp.where(row_mask, h, 0.0)
        mean = jnp.sum(hm, axis=0, keepdims=True) * inv_n
        d = jnp.where(row_mask, h - mean, 0.0)
    var = jnp.sum(d * d, axis=0, keepdims=True) * inv_n
    scale = gamma * jax.lax.rsqrt(var + EPS)   # (1, F)
    shift = beta - mean * scale                # (1, F)
    hn = h * scale + shift                     # 1 mul + 1 add per element
    return hn * jax.nn.sigmoid(hn)             # Swish (sigmoid -> EUP)


def swishnn_kernel(
    x_ref,
    w1_ref, g1_ref, be1_ref,
    w2_ref, g2_ref, be2_ref,
    w3_ref, b3_ref,
    o_ref,
    *, n_rows,
):
    padded_rows = x_ref.shape[0]
    if padded_rows == n_rows:
        row_mask = None
    else:
        row_mask = (
            jax.lax.broadcasted_iota(jnp.int32, (padded_rows, 1), 0) < n_rows
        )

    x = x_ref[...]  # bf16 (pre-cast in wrapper)

    # Layer 1: Linear (bias dropped: cancelled by BN) -> BN -> Swish
    h1 = jnp.dot(x, w1_ref[...], preferred_element_type=jnp.float32)
    s1 = _bn_swish(h1, g1_ref[...], be1_ref[...], n_rows, row_mask)

    # Layer 2: Linear (bias dropped) -> BN -> Swish
    h2 = jnp.dot(s1.astype(jnp.bfloat16), w2_ref[...],
                 preferred_element_type=jnp.float32)
    s2 = _bn_swish(h2, g2_ref[...], be2_ref[...], n_rows, row_mask)

    # Output layer: Linear (bias kept)
    out = jnp.dot(s2.astype(jnp.bfloat16), w3_ref[...],
                  preferred_element_type=jnp.float32) + b3_ref[...]
    o_ref[...] = out.astype(o_ref.dtype)


def swish_nn_forward(x, params):
    """x: (batch, n_features) float32. params: dict of weights (see init)."""
    batch, n_features = x.shape
    h1 = params["w1"].shape[1]
    h2 = params["w2"].shape[1]
    n_output = params["w3"].shape[1]

    bp = _round_up(batch, SUBLANE)
    fp = _round_up(n_features, LANE)
    h1p = _round_up(h1, LANE)
    h2p = _round_up(h2, LANE)
    op = _round_up(n_output, LANE)

    def pad2(a, r, c, cval=0.0):
        return jnp.pad(a, ((0, r - a.shape[0]), (0, c - a.shape[1])),
                       constant_values=cval)

    # Weights pre-cast to bf16 once (MXU operands); BN params stay f32.
    x_p = pad2(x, bp, fp).astype(jnp.bfloat16)
    w1_p = pad2(params["w1"], fp, h1p).astype(jnp.bfloat16)
    w2_p = pad2(params["w2"], h1p, h2p).astype(jnp.bfloat16)
    w3_p = pad2(params["w3"], h2p, op).astype(jnp.bfloat16)
    g1_p = pad2(params["g1"], 1, h1p, cval=1.0)
    be1_p = pad2(params["be1"], 1, h1p)
    g2_p = pad2(params["g2"], 1, h2p, cval=1.0)
    be2_p = pad2(params["be2"], 1, h2p)
    b3_p = pad2(params["b3"], 1, op)

    args = (x_p, w1_p, g1_p, be1_p, w2_p, g2_p, be2_p, w3_p, b3_p)

    def full(a):
        shape = a.shape
        return pl.BlockSpec(shape, lambda *_: tuple(0 for _ in shape))

    out_shape = jax.ShapeDtypeStruct((bp, op), jnp.float32)

    # VMEM budget: double-buffered I/O + f32 hidden activations, with headroom;
    # capped well under v7x's 64 MiB physical VMEM.
    in_bytes = sum(a.size * a.dtype.itemsize for a in args)
    out_bytes = bp * op * 4
    act_bytes = bp * (h1p + h2p) * 4 * 2
    vmem_limit = int(min(max(2 * (in_bytes + out_bytes) + act_bytes,
                             32 * 1024 * 1024),
                         48 * 1024 * 1024))

    kernel = functools.partial(swishnn_kernel, n_rows=batch)

    out = pl.pallas_call(
        kernel,
        out_shape=out_shape,
        grid=(),
        in_specs=[full(a) for a in args],
        out_specs=pl.BlockSpec((bp, op), lambda *_: (0, 0)),
        compiler_params=pltpu.CompilerParams(vmem_limit_bytes=vmem_limit),
    )(*args)

    return out[:batch, :n_output]


def init_params(key, n_features, hidden_size1, hidden_size2, n_output):
    """Deterministic synthetic init.  Linear weights stored as (in, out).
    b1/b2 are kept for the reference (PyTorch semantics) even though the
    kernel can drop them (cancelled by BatchNorm)."""
    ks = jax.random.split(key, 6)

    def lin(kw, kb, fan_in, fan_out):
        bound = 1.0 / jnp.sqrt(jnp.float32(fan_in))
        w = jax.random.uniform(kw, (fan_in, fan_out), jnp.float32, -bound, bound)
        b = jax.random.uniform(kb, (1, fan_out), jnp.float32, -bound, bound)
        return w, b

    w1, b1 = lin(ks[0], ks[1], n_features, hidden_size1)
    w2, b2 = lin(ks[2], ks[3], hidden_size1, hidden_size2)
    w3, b3 = lin(ks[4], ks[5], hidden_size2, n_output)

    return {
        "w1": w1, "b1": b1,
        "g1": jnp.ones((1, hidden_size1), jnp.float32),
        "be1": jnp.zeros((1, hidden_size1), jnp.float32),
        "w2": w2, "b2": b2,
        "g2": jnp.ones((1, hidden_size2), jnp.float32),
        "be2": jnp.zeros((1, hidden_size2), jnp.float32),
        "w3": w3, "b3": b3,
    }


def swish_nn_reference(x, p):
    """Pure-JAX f32 reference with exact PyTorch (training-mode) semantics,
    including the b1/b2 biases the kernel legitimately drops."""
    def bn_swish(h, g, b):
        m = jnp.mean(h, axis=0, keepdims=True)
        v = jnp.mean((h - m) ** 2, axis=0, keepdims=True)
        hn = (h - m) / jnp.sqrt(v + EPS) * g + b
        return hn * jax.nn.sigmoid(hn)

    h = x @ p["w1"] + p["b1"]
    h = bn_swish(h, p["g1"], p["be1"])
    h = h @ p["w2"] + p["b2"]
    h = bn_swish(h, p["g2"], p["be2"])
    return h @ p["w3"] + p["b3"]


if __name__ == "__main__":
    # Small shapes consistent with the module's forward (x: (batch, n_features)).
    batch, n_features, hidden1, hidden2, n_output = 8, 32, 64, 32, 8

    key = jax.random.PRNGKey(0)
    kx, kp = jax.random.split(key)
    x = jax.random.normal(kx, (batch, n_features), jnp.float32)
    params = init_params(kp, n_features, hidden1, hidden2, n_output)

    out = swish_nn_forward(x, params)
    out = jax.block_until_ready(out)

    ref = swish_nn_reference(x, params)
    assert out.shape == (batch, n_output)
    # Loose tolerance: kernel intentionally uses bf16 MXU operands (f32 accum).
    assert jnp.allclose(out, ref, atol=3e-2, rtol=3e-2), "mismatch vs reference"

    print("KERNEL_OK")
</pallas_src>

<mosaic_0001>
module attributes {stable_mosaic.version = 11 : i64} {
  func.func @swishnn_kernel(%arg0: memref<8x128xbf16, #tpu.memory_space<vmem>>, %arg1: memref<128x128xbf16, #tpu.memory_space<vmem>>, %arg2: memref<1x128xf32, #tpu.memory_space<vmem>>, %arg3: memref<1x128xf32, #tpu.memory_space<vmem>>, %arg4: memref<128x128xbf16, #tpu.memory_space<vmem>>, %arg5: memref<1x128xf32, #tpu.memory_space<vmem>>, %arg6: memref<1x128xf32, #tpu.memory_space<vmem>>, %arg7: memref<128x128xbf16, #tpu.memory_space<vmem>>, %arg8: memref<1x128xf32, #tpu.memory_space<vmem>>, %arg9: memref<8x128xf32, #tpu.memory_space<vmem>>) attributes {dimension_semantics = [], scalar_prefetch = 0 : i64, scratch_operands = 0 : i64, tpu.core_type = #tpu.core_type<tc>} {
    %c0 = arith.constant 0 : index
    %c0_0 = arith.constant 0 : index
    %0 = vector.load %arg0[%c0, %c0_0] : memref<8x128xbf16, #tpu.memory_space<vmem>>, vector<8x128xbf16>
    %c0_1 = arith.constant 0 : index
    %c0_2 = arith.constant 0 : index
    %1 = vector.load %arg1[%c0_1, %c0_2] : memref<128x128xbf16, #tpu.memory_space<vmem>>, vector<128x128xbf16>
    %cst = arith.constant dense<0.000000e+00> : vector<8x128xf32>
    %2 = tpu.matmul %0, %1, %cst {dimension_numbers = #tpu.dot_dimension_numbers<[1], [0], [0], [1], [0, 0, 1, 1], [], []>} : vector<8x128xbf16>, vector<128x128xbf16>, vector<8x128xf32> -> vector<8x128xf32>
    %c0_3 = arith.constant 0 : index
    %c0_4 = arith.constant 0 : index
    %3 = vector.load %arg2[%c0_3, %c0_4] : memref<1x128xf32, #tpu.memory_space<vmem>>, vector<1x128xf32>
    %c0_5 = arith.constant 0 : index
    %c0_6 = arith.constant 0 : index
    %4 = vector.load %arg3[%c0_5, %c0_6] : memref<1x128xf32, #tpu.memory_space<vmem>>, vector<1x128xf32>
    %cst_7 = arith.constant dense<0.000000e+00> : vector<128xf32>
    %5 = vector.multi_reduction <add>, %2, %cst_7 [0] : vector<8x128xf32> to vector<128xf32>
    %6 = vector.shape_cast %5 : vector<128xf32> to vector<1x128xf32>
    %cst_8 = arith.constant 1.250000e-01 : f32
    %7 = vector.broadcast %cst_8 : f32 to vector<1x128xf32>
    %8 = arith.mulf %6, %7 : vector<1x128xf32>
    %9 = vector.broadcast %8 : vector<1x128xf32> to vector<8x128xf32>
    %10 = arith.subf %2, %9 : vector<8x128xf32>
    %11 = arith.mulf %10, %10 : vector<8x128xf32>
    %cst_9 = arith.constant dense<0.000000e+00> : vector<128xf32>
    %12 = vector.multi_reduction <add>, %11, %cst_9 [0] : vector<8x128xf32> to vector<128xf32>
    %13 = vector.shape_cast %12 : vector<128xf32> to vector<1x128xf32>
    %cst_10 = arith.constant 1.250000e-01 : f32
    %14 = vector.broadcast %cst_10 : f32 to vector<1x128xf32>
    %15 = arith.mulf %13, %14 : vector<1x128xf32>
    %cst_11 = arith.constant 9.99999974E-6 : f32
    %16 = vector.broadcast %cst_11 : f32 to vector<1x128xf32>
    %17 = arith.addf %15, %16 : vector<1x128xf32>
    %18 = math.rsqrt %17 : vector<1x128xf32>
    %19 = arith.mulf %3, %18 : vector<1x128xf32>
    %20 = arith.mulf %8, %19 : vector<1x128xf32>
    %21 = arith.subf %4, %20 : vector<1x128xf32>
    %22 = vector.broadcast %19 : vector<1x128xf32> to vector<8x128xf32>
    %23 = arith.mulf %2, %22 : vector<8x128xf32>
    %24 = vector.broadcast %21 : vector<1x128xf32> to vector<8x128xf32>
    %25 = arith.addf %23, %24 : vector<8x128xf32>
    %26 = arith.negf %25 : vector<8x128xf32>
    %27 = math.exp %26 : vector<8x128xf32>
    %cst_12 = arith.constant 1.000000e+00 : f32
    %28 = vector.broadcast %cst_12 : f32 to vector<8x128xf32>
    %29 = arith.addf %28, %27 : vector<8x128xf32>
    %30 = arith.divf %28, %29 : vector<8x128xf32>
    %31 = arith.mulf %25, %30 : vector<8x128xf32>
    %32 = arith.truncf %31 : vector<8x128xf32> to vector<8x128xbf16>
    %c0_13 = arith.constant 0 : index
    %c0_14 = arith.constant 0 : index
    %33 = vector.load %arg4[%c0_13, %c0_14] : memref<128x128xbf16, #tpu.memory_space<vmem>>, vector<128x128xbf16>
    %cst_15 = arith.constant dense<0.000000e+00> : vector<8x128xf32>
    %34 = tpu.matmul %32, %33, %cst_15 {dimension_numbers = #tpu.dot_dimension_numbers<[1], [0], [0], [1], [0, 0, 1, 1], [], []>} : vector<8x128xbf16>, vector<128x128xbf16>, vector<8x128xf32> -> vector<8x128xf32>
    %c0_16 = arith.constant 0 : index
    %c0_17 = arith.constant 0 : index
    %35 = vector.load %arg5[%c0_16, %c0_17] : memref<1x128xf32, #tpu.memory_space<vmem>>, vector<1x128xf32>
    %c0_18 = arith.constant 0 : index
    %c0_19 = arith.constant 0 : index
    %36 = vector.load %arg6[%c0_18, %c0_19] : memref<1x128xf32, #tpu.memory_space<vmem>>, vector<1x128xf32>
    %cst_20 = arith.constant dense<0.000000e+00> : vector<128xf32>
    %37 = vector.multi_reduction <add>, %34, %cst_20 [0] : vector<8x128xf32> to vector<128xf32>
    %38 = vector.shape_cast %37 : vector<128xf32> to vector<1x128xf32>
    %cst_21 = arith.constant 1.250000e-01 : f32
    %39 = vector.broadcast %cst_21 : f32 to vector<1x128xf32>
    %40 = arith.mulf %38, %39 : vector<1x128xf32>
    %41 = vector.broadcast %40 : vector<1x128xf32> to vector<8x128xf32>
    %42 = arith.subf %34, %41 : vector<8x128xf32>
    %43 = arith.mulf %42, %42 : vector<8x128xf32>
    %cst_22 = arith.constant dense<0.000000e+00> : vector<128xf32>
    %44 = vector.multi_reduction <add>, %43, %cst_22 [0] : vector<8x128xf32> to vector<128xf32>
    %45 = vector.shape_cast %44 : vector<128xf32> to vector<1x128xf32>
    %cst_23 = arith.constant 1.250000e-01 : f32
    %46 = vector.broadcast %cst_23 : f32 to vector<1x128xf32>
    %47 = arith.mulf %45, %46 : vector<1x128xf32>
    %cst_24 = arith.constant 9.99999974E-6 : f32
    %48 = vector.broadcast %cst_24 : f32 to vector<1x128xf32>
    %49 = arith.addf %47, %48 : vector<1x128xf32>
    %50 = math.rsqrt %49 : vector<1x128xf32>
    %51 = arith.mulf %35, %50 : vector<1x128xf32>
    %52 = arith.mulf %40, %51 : vector<1x128xf32>
    %53 = arith.subf %36, %52 : vector<1x128xf32>
    %54 = vector.broadcast %51 : vector<1x128xf32> to vector<8x128xf32>
    %55 = arith.mulf %34, %54 : vector<8x128xf32>
    %56 = vector.broadcast %53 : vector<1x128xf32> to vector<8x128xf32>
    %57 = arith.addf %55, %56 : vector<8x128xf32>
    %58 = arith.negf %57 : vector<8x128xf32>
    %59 = math.exp %58 : vector<8x128xf32>
    %cst_25 = arith.constant 1.000000e+00 : f32
    %60 = vector.broadcast %cst_25 : f32 to vector<8x128xf32>
    %61 = arith.addf %60, %59 : vector<8x128xf32>
    %62 = arith.divf %60, %61 : vector<8x128xf32>
    %63 = arith.mulf %57, %62 : vector<8x128xf32>
    %64 = arith.truncf %63 : vector<8x128xf32> to vector<8x128xbf16>
    %c0_26 = arith.constant 0 : index
    %c0_27 = arith.constant 0 : index
    %65 = vector.load %arg7[%c0_26, %c0_27] : memref<128x128xbf16, #tpu.memory_space<vmem>>, vector<128x128xbf16>
    %cst_28 = arith.constant dense<0.000000e+00> : vector<8x128xf32>
    %66 = tpu.matmul %64, %65, %cst_28 {dimension_numbers = #tpu.dot_dimension_numbers<[1], [0], [0], [1], [0, 0, 1, 1], [], []>} : vector<8x128xbf16>, vector<128x128xbf16>, vector<8x128xf32> -> vector<8x128xf32>
    %c0_29 = arith.constant 0 : index
    %c0_30 = arith.constant 0 : index
    %67 = vector.load %arg8[%c0_29, %c0_30] : memref<1x128xf32, #tpu.memory_space<vmem>>, vector<1x128xf32>
    %68 = vector.broadcast %67 : vector<1x128xf32> to vector<8x128xf32>
    %69 = arith.addf %66, %68 : vector<8x128xf32>
    %c0_31 = arith.constant 0 : index
    %c0_32 = arith.constant 0 : index
    %70 = vector.load %arg9[%c0_31, %c0_32] : memref<8x128xf32, #tpu.memory_space<vmem>>, vector<8x128xf32>
    tpu.vector_store %arg9[%c0_31, %c0_32], %69 {strides = array<i32>} : memref<8x128xf32, #tpu.memory_space<vmem>>, vector<8x128xf32>,
    return
  }
}

</mosaic_0001>

<llo_original>
// kernel: tpu_custom_call.1
$region0: #{tpu_custom_call.1}
  #allocation0 [shape = 'u32[]', space=smem, size = 0x4, offset = 0x4, fixed_abs, tag = 'smem constant byte address 0x4 - core index']
  #allocation1 [shape = 'u32[144,128]{1,0:T(1,128)}', space=vmem, size = 0x12000, scoped, tag = 'internal scratch']
  %s0 = inlined_call_operand.hbm [shape: bf16[8,128], index: 0, kind: input, shape index: {}]
  %s1 = inlined_call_operand.hbm [shape: bf16[128,128], index: 1, kind: input, shape index: {}]
  %s2 = inlined_call_operand.vmem [shape: f32[1,128], index: 2, kind: input, shape index: {}]
  %s3 = inlined_call_operand.vmem [shape: f32[1,128], index: 3, kind: input, shape index: {}]
  %s4 = inlined_call_operand.hbm [shape: bf16[128,128], index: 4, kind: input, shape index: {}]
  %s5 = inlined_call_operand.vmem [shape: f32[1,128], index: 5, kind: input, shape index: {}]
  %s6 = inlined_call_operand.vmem [shape: f32[1,128], index: 6, kind: input, shape index: {}]
  %s7 = inlined_call_operand.hbm [shape: bf16[128,128], index: 7, kind: input, shape index: {}]
  %s8 = inlined_call_operand.vmem [shape: f32[1,128], index: 8, kind: input, shape index: {}]
  %s9 = inlined_call_operand.hbm [shape: f32[8,128], index: 9, kind: output, shape index: {}]
  %s10 = sld [smem:[#allocation0]]
  $region62: #{tpu_custom_call.1} parent=0
    _
  %s12 = ssub.s32 1, %s10
  %s13 = scalar_select 0, %s12, %s10
  $region1: #{tpu_custom_call.1} parent=0
    #allocation2 [shape = 'u8[2048]{0}', space=vmem, size = 0x800, scoped, tag = 'input window, operand 0, single buffered']
    #allocation3 [shape = 's32[1]{0}', space=sflag, size = 0x4, scoped, tag = 'scoped memory for tpu_custom_call.1']
    #allocation4 [shape = 's32[1]{0}', space=sflag, size = 0x4, scoped, tag = 'scoped memory for tpu_custom_call.1']
    #allocation5 [shape = 'u8[32768]{0}', space=vmem, size = 0x8000, scoped, tag = 'input window, operand 1, single buffered']
    #allocation6 [shape = 's32[1]{0}', space=sflag, size = 0x4, scoped, tag = 'scoped memory for tpu_custom_call.1']
    #allocation7 [shape = 'u8[32768]{0}', space=vmem, size = 0x8000, scoped, tag = 'input window, operand 4, single buffered']
    #allocation8 [shape = 'u8[32768]{0}', space=vmem, size = 0x8000, scoped, tag = 'input window, operand 7, single buffered']
    #allocation9 [shape = 's32[1]{0}', space=sflag, size = 0x4, scoped, tag = 'scoped memory for tpu_custom_call.1']
    #allocation10 [shape = 'u8[4096]{0}', space=vmem, size = 0x1000, scoped, tag = 'output window, operand 0, single buffered']
    %14 = vsyncpa [#allocation3], 0
    %15 = vsyncpa [#allocation6], 0
    %16 = vsyncpa [#allocation9], 0
    %17 = vsyncpa [#allocation4], 0
    // Predicated region
    $region2: #{tpu_custom_call.1} parent=1 // pred_check
      _
    $region3: #{tpu_custom_call.1} parent=1 // pred_check_branch
      %19 = sbr.rel (0) target = $region5
    $region4: #{tpu_custom_call.1} parent=1 // pred_region
      %s21 = ssub.s32 64, 64
      %22 = vsyncadd [#allocation3], %s21
      %s24 = sshll.u32 [#allocation2], 4
      %s25 = int_to_ptr.vmem [resolvable:$true] %s24
      %27 = dma.hbm_to_vmem [thread:$0]  %s0, 64, %s25, [#allocation3]
    $region5: #{tpu_custom_call.1} parent=1 // pred_fallthru
      _
    // Predicated region
    $region6: #{tpu_custom_call.1} parent=1 // pred_check
      _
    $region7: #{tpu_custom_call.1} parent=1 // pred_check_branch
      %29 = sbr.rel (0) target = $region9
    $region8: #{tpu_custom_call.1} parent=1 // pred_region
      %s31 = ssub.s32 1024, 1024
      %32 = vsyncadd [#allocation6], %s31
      %s33 = sshll.u32 [#allocation5], 4
      %s34 = int_to_ptr.vmem [resolvable:$true] %s33
      %39 = dma.hbm_to_vmem [thread:$0]  %s1, 1024, %s34, [#allocation6], 64, 64, 4
    $region9: #{tpu_custom_call.1} parent=1 // pred_fallthru
      _
    // Predicated region
    $region10: #{tpu_custom_call.1} parent=1 // pred_check
      _
    $region11: #{tpu_custom_call.1} parent=1 // pred_check_branch
      %41 = sbr.rel (0) target = $region13
    $region12: #{tpu_custom_call.1} parent=1 // pred_region
      _
    $region13: #{tpu_custom_call.1} parent=1 // pred_fallthru
      _
    // Predicated region
    $region14: #{tpu_custom_call.1} parent=1 // pred_check
      _
    $region15: #{tpu_custom_call.1} parent=1 // pred_check_branch
      %43 = sbr.rel (0) target = $region17
    $region16: #{tpu_custom_call.1} parent=1 // pred_region
      _
    $region17: #{tpu_custom_call.1} parent=1 // pred_fallthru
      _
    // Predicated region
    $region18: #{tpu_custom_call.1} parent=1 // pred_check
      _
    $region19: #{tpu_custom_call.1} parent=1 // pred_check_branch
      %45 = sbr.rel (0) target = $region21
    $region20: #{tpu_custom_call.1} parent=1 // pred_region
      %s47 = ssub.s32 1024, 1024
      %48 = vsyncadd [#allocation6], %s47
      %s49 = sshll.u32 [#allocation7], 4
      %s50 = int_to_ptr.vmem [resolvable:$true] %s49
      %55 = dma.hbm_to_vmem [thread:$0]  %s4, 1024, %s50, [#allocation6], 64, 64, 4
    $region21: #{tpu_custom_call.1} parent=1 // pred_fallthru
      _
    // Predicated region
    $region22: #{tpu_custom_call.1} parent=1 // pred_check
      _
    $region23: #{tpu_custom_call.1} parent=1 // pred_check_branch
      %57 = sbr.rel (0) target = $region25
    $region24: #{tpu_custom_call.1} parent=1 // pred_region
      _
    $region25: #{tpu_custom_call.1} parent=1 // pred_fallthru
      _
    // Predicated region
    $region26: #{tpu_custom_call.1} parent=1 // pred_check
      _
    $region27: #{tpu_custom_call.1} parent=1 // pred_check_branch
      %59 = sbr.rel (0) target = $region29
    $region28: #{tpu_custom_call.1} parent=1 // pred_region
      _
    $region29: #{tpu_custom_call.1} parent=1 // pred_fallthru
      _
    // Predicated region
    $region30: #{tpu_custom_call.1} parent=1 // pred_check
      _
    $region31: #{tpu_custom_call.1} parent=1 // pred_check_branch
      %61 = sbr.rel (0) target = $region33
    $region32: #{tpu_custom_call.1} parent=1 // pred_region
      %s63 = ssub.s32 1024, 1024
      %64 = vsyncadd [#allocation9], %s63
      %s65 = sshll.u32 [#allocation8], 4
      %s66 = int_to_ptr.vmem [resolvable:$true] %s65
      %71 = dma.hbm_to_vmem [thread:$0]  %s7, 1024, %s66, [#allocation9], 64, 64, 4
    $region33: #{tpu_custom_call.1} parent=1 // pred_fallthru
      _
    // Predicated region
    $region34: #{tpu_custom_call.1} parent=1 // pred_check
      _
    $region35: #{tpu_custom_call.1} parent=1 // pred_check_branch
      %73 = sbr.rel (0) target = $region37
    $region36: #{tpu_custom_call.1} parent=1 // pred_region
      _
    $region37: #{tpu_custom_call.1} parent=1 // pred_fallthru
      _
    // Predicated region
    $region38: #{tpu_custom_call.1} parent=1 // pred_check
      _
    $region39: #{tpu_custom_call.1} parent=1 // pred_check_branch
      %75 = sbr.rel (0) target = $region41
    $region40: #{tpu_custom_call.1} parent=1 // pred_region
      %76 = dma.done [#allocation3], 64
    $region41: #{tpu_custom_call.1} parent=1 // pred_fallthru
      _
    // Predicated region
    $region42: #{tpu_custom_call.1} parent=1 // pred_check
      _
    $region43: #{tpu_custom_call.1} parent=1 // pred_check_branch
      %78 = sbr.rel (0) target = $region45
    $region44: #{tpu_custom_call.1} parent=1 // pred_region
      %79 = dma.done [#allocation6], 1024
    $region45: #{tpu_custom_call.1} parent=1 // pred_fallthru
      _
    // Predicated region
    $region46: #{tpu_custom_call.1} parent=1 // pred_check
      _
    $region47: #{tpu_custom_call.1} parent=1 // pred_check_branch
      %81 = sbr.rel (0) target = $region49
    $region48: #{tpu_custom_call.1} parent=1 // pred_region
      %82 = dma.done [#allocation6], 1024
    $region49: #{tpu_custom_call.1} parent=1 // pred_fallthru
      _
    // Predicated region
    $region50: #{tpu_custom_call.1} parent=1 // pred_check
      _
    $region51: #{tpu_custom_call.1} parent=1 // pred_check_branch
      %84 = sbr.rel (0) target = $region53
    $region52: #{tpu_custom_call.1} parent=1 // pred_region
      %85 = dma.done [#allocation9], 1024
    $region53: #{tpu_custom_call.1} parent=1 // pred_fallthru
      _
    %v87 = vld [vmem:[#allocation2] sm:$0xf]
    %v88 = vld [vmem:[#allocation5] sm:$0xf]
    %v89 = vld [vmem:[#allocation5 + $0x4] sm:$0xf]
    %v90 = vld [vmem:[#allocation5 + $0x8] sm:$0xf]
    %v91 = vld [vmem:[#allocation5 + $0xc] sm:$0xf]
    %v92 = vld [vmem:[#allocation5 + $0x10] sm:$0xf]
    %v93 = vld [vmem:[#allocation5 + $0x14] sm:$0xf]
    %v94 = vld [vmem:[#allocation5 + $0x18] sm:$0xf]
    %v95 = vld [vmem:[#allocation5 + $0x1c] sm:$0xf]
    %v96 = vld [vmem:[#allocation5 + $0x20] sm:$0xf]
    %v97 = vld [vmem:[#allocation5 + $0x24] sm:$0xf]
    %v98 = vld [vmem:[#allocation5 + $0x28] sm:$0xf]
    %v99 = vld [vmem:[#allocation5 + $0x2c] sm:$0xf]
    %v100 = vld [vmem:[#allocation5 + $0x30] sm:$0xf]
    %v101 = vld [vmem:[#allocation5 + $0x34] sm:$0xf]
    %v102 = vld [vmem:[#allocation5 + $0x38] sm:$0xf]
    %v103 = vld [vmem:[#allocation5 + $0x3c] sm:$0xf]
    %v120 = vunpack.c.l.b16 %v88
    %v121 = vunpack.c.l.b16 %v89
    %v122 = vunpack.c.l.b16 %v90
    %v123 = vunpack.c.l.b16 %v91
    %v124 = vunpack.c.l.b16 %v92
    %v125 = vunpack.c.l.b16 %v93
    %v126 = vunpack.c.l.b16 %v94
    %v127 = vunpack.c.l.b16 %v95
    %v128 = vunpack.c.l.b16 %v96
    %v129 = vunpack.c.l.b16 %v97
    %v130 = vunpack.c.l.b16 %v98
    %v131 = vunpack.c.l.b16 %v99
    %v132 = vunpack.c.l.b16 %v100
    %v133 = vunpack.c.l.b16 %v101
    %v134 = vunpack.c.l.b16 %v102
    %v135 = vunpack.c.l.b16 %v103
    %v136 = vpack.c.b16 %v121, %v120
    %v137 = vpack.c.b16 %v123, %v122
    %v138 = vpack.c.b16 %v125, %v124
    %v139 = vpack.c.b16 %v127, %v126
    %v140 = vpack.c.b16 %v129, %v128
    %v141 = vpack.c.b16 %v131, %v130
    %v142 = vpack.c.b16 %v133, %v132
    %v143 = vpack.c.b16 %v135, %v134
    %152 = vmatprep.subr.bf16.mxu0 0
    %153 = vmatpush1.bf16.msra.mxu0 %v143
    %154 = vmatprep.subr.bf16.mxu0 0
    %155 = vmatpush1.bf16.msra.mxu0 %v142
    %156 = vmatprep.subr.bf16.mxu0 0
    %157 = vmatpush1.bf16.msra.mxu0 %v141
    %158 = vmatprep.subr.bf16.mxu0 0
    %159 = vmatpush1.bf16.msra.mxu0 %v140
    %160 = vmatprep.subr.bf16.mxu0 0
    %161 = vmatpush1.bf16.msra.mxu0 %v139
    %162 = vmatprep.subr.bf16.mxu0 0
    %163 = vmatpush1.bf16.msra.mxu0 %v138
    %164 = vmatprep.subr.bf16.mxu0 0
    %165 = vmatpush1.bf16.msra.mxu0 %v137
    %166 = vmatprep.subr.bf16.mxu0 0
    %167 = vmatpush1.bf16.msra.mxu0 %v136
    %168 = vmatprep.subr.bf16.mxu0 0
    %169 = vmatpush2.bf16.msra.mxu0 0
    %170 = vmatprep.subr.bf16.mxu0 0
    %171 = vmatpush2.bf16.msra.mxu0 0
    %172 = vmatprep.subr.bf16.mxu0 0
    %173 = vmatpush2.bf16.msra.mxu0 0
    %174 = vmatprep.subr.bf16.mxu0 0
    %175 = vmatpush2.bf16.msra.mxu0 0
    %176 = vmatprep.subr.bf16.mxu0 0
    %177 = vmatpush2.bf16.msra.mxu0 0
    %178 = vmatprep.subr.bf16.mxu0 0
    %179 = vmatpush2.bf16.msra.mxu0 0
    %180 = vmatprep.subr.bf16.mxu0 0
    %181 = vmatpush2.bf16.msra.mxu0 0
    %182 = vmatprep.subr.bf16.mxu0 0
    %183 = vmatpush2.bf16.msra.mxu0 0
    %184 = vmatprep.mubr.bf16.mxu0 0
    %185 = vmatmul.mubr.bf16.gmra.mxu0 %v87
    %v186 = vpop.f32.mrf.mxu0
    %v187 = vadd.f32 0.0, %v186
    %v188 = vpop.f32.mrf.mxu0
    %v189 = vpop.f32.mrf.mxu0
    %v190 = vpop.f32.mrf.mxu0
    %191 = vdwg.mxu0
    %v192 = vld [vmem:[%s2] sm:$0x1]
    %v193 = vld [vmem:[%s3] sm:$0x1]
    %v194 = vrot.slane %v187, 4
    %v195 = vadd.f32 %v187, %v194
    %v196 = vrot.slane %v195, 2
    %v197 = vadd.f32 %v195, %v196
    %v198 = vrot.slane %v197, 1
    %v199 = vadd.f32 %v197, %v198
    %v200 = vmul.f32 %v199, 0.125
    %v201 = vsub.f32 %v187, %v200
    %v202 = vmul.f32 %v201, %v201
    %v203 = vrot.slane %v202, 4
    %v204 = vadd.f32 %v202, %v203
    %v205 = vrot.slane %v204, 2
    %v206 = vadd.f32 %v204, %v205
    %v207 = vrot.slane %v206, 1
    %v208 = vadd.f32 %v206, %v207
    %v209 = vmul.f32 %v208, 0.125
    %v210 = vadd.f32 %v209, 1e-05
    %v211 = vrsqrt.pop %v210
    %v212 = vmul.f32 %v192, %v211
    %v213 = vmul.f32 %v200, %v212
    %v214 = vsub.f32 %v193, %v213
    %v216 = vlaneseq
    %v217 = vshrl.u32 %v216, 7
    %v218 = vsub.s32 0, %v217
    %v219 = vrot.slane %v212, %v218
    %v221 = vmul.f32 %v187, %v219
    %v223 = vlaneseq
    %v224 = vshrl.u32 %v223, 7
    %v225 = vsub.s32 0, %v224
    %v226 = vrot.slane %v214, %v225
    %v228 = vadd.f32 %v221, %v226
    %v229 = vxor.u32 %v228, 2147483648
    %v230 = vmul.f32 %v229, 1.442695
    %v231 = vpow.pop %v230
    %v232 = vadd.f32 %v231, 1.0
    %v233 = vrcp.pop %v232
    %v234 = vmul.f32 1.0, %v233
    %v235 = vmul.f32 %v228, %v234
    %v236 = vpack.c.bf16 %v235, %v235
    %v237 = vld [vmem:[#allocation7] sm:$0xf]
    %v238 = vld [vmem:[#allocation7 + $0x4] sm:$0xf]
    %v239 = vld [vmem:[#allocation7 + $0x8] sm:$0xf]
    %v240 = vld [vmem:[#allocation7 + $0xc] sm:$0xf]
    %v241 = vld [vmem:[#allocation7 + $0x10] sm:$0xf]
    %v242 = vld [vmem:[#allocation7 + $0x14] sm:$0xf]
    %v243 = vld [vmem:[#allocation7 + $0x18] sm:$0xf]
    %v244 = vld [vmem:[#allocation7 + $0x1c] sm:$0xf]
    %v245 = vld [vmem:[#allocation7 + $0x20] sm:$0xf]
    %v246 = vld [vmem:[#allocation7 + $0x24] sm:$0xf]
    %v247 = vld [vmem:[#allocation7 + $0x28] sm:$0xf]
    %v248 = vld [vmem:[#allocation7 + $0x2c] sm:$0xf]
    %v249 = vld [vmem:[#allocation7 + $0x30] sm:$0xf]
    %v250 = vld [vmem:[#allocation7 + $0x34] sm:$0xf]
    %v251 = vld [vmem:[#allocation7 + $0x38] sm:$0xf]
    %v252 = vld [vmem:[#allocation7 + $0x3c] sm:$0xf]
    %v269 = vunpack.c.l.b16 %v237
    %v270 = vunpack.c.l.b16 %v238
    %v271 = vunpack.c.l.b16 %v239
    %v272 = vunpack.c.l.b16 %v240
    %v273 = vunpack.c.l.b16 %v241
    %v274 = vunpack.c.l.b16 %v242
    %v275 = vunpack.c.l.b16 %v243
    %v276 = vunpack.c.l.b16 %v244
    %v277 = vunpack.c.l.b16 %v245
    %v278 = vunpack.c.l.b16 %v246
    %v279 = vunpack.c.l.b16 %v247
    %v280 = vunpack.c.l.b16 %v248
    %v281 = vunpack.c.l.b16 %v249
    %v282 = vunpack.c.l.b16 %v250
    %v283 = vunpack.c.l.b16 %v251
    %v284 = vunpack.c.l.b16 %v252
    %v285 = vpack.c.b16 %v270, %v269
    %v286 = vpack.c.b16 %v272, %v271
    %v287 = vpack.c.b16 %v274, %v273
    %v288 = vpack.c.b16 %v276, %v275
    %v289 = vpack.c.b16 %v278, %v277
    %v290 = vpack.c.b16 %v280, %v279
    %v291 = vpack.c.b16 %v282, %v281
    %v292 = vpack.c.b16 %v284, %v283
    %301 = vmatprep.subr.bf16.mxu0 0
    %302 = vmatpush1.bf16.msra.mxu0 %v292
    %303 = vmatprep.subr.bf16.mxu0 0
    %304 = vmatpush1.bf16.msra.mxu0 %v291
    %305 = vmatprep.subr.bf16.mxu0 0
    %306 = vmatpush1.bf16.msra.mxu0 %v290
    %307 = vmatprep.subr.bf16.mxu0 0
    %308 = vmatpush1.bf16.msra.mxu0 %v289
    %309 = vmatprep.subr.bf16.mxu0 0
    %310 = vmatpush1.bf16.msra.mxu0 %v288
    %311 = vmatprep.subr.bf16.mxu0 0
    %312 = vmatpush1.bf16.msra.mxu0 %v287
    %313 = vmatprep.subr.bf16.mxu0 0
    %314 = vmatpush1.bf16.msra.mxu0 %v286
    %315 = vmatprep.subr.bf16.mxu0 0
    %316 = vmatpush1.bf16.msra.mxu0 %v285
    %317 = vmatprep.subr.bf16.mxu0 0
    %318 = vmatpush2.bf16.msra.mxu0 0
    %319 = vmatprep.subr.bf16.mxu0 0
    %320 = vmatpush2.bf16.msra.mxu0 0
    %321 = vmatprep.subr.bf16.mxu0 0
    %322 = vmatpush2.bf16.msra.mxu0 0
    %323 = vmatprep.subr.bf16.mxu0 0
    %324 = vmatpush2.bf16.msra.mxu0 0
    %325 = vmatprep.subr.bf16.mxu0 0
    %326 = vmatpush2.bf16.msra.mxu0 0
    %327 = vmatprep.subr.bf16.mxu0 0
    %328 = vmatpush2.bf16.msra.mxu0 0
    %329 = vmatprep.subr.bf16.mxu0 0
    %330 = vmatpush2.bf16.msra.mxu0 0
    %331 = vmatprep.subr.bf16.mxu0 0
    %332 = vmatpush2.bf16.msra.mxu0 0
    %333 = vmatprep.mubr.bf16.mxu0 0
    %334 = vmatmul.mubr.bf16.gmra.mxu0 %v236
    %v335 = vpop.f32.mrf.mxu0
    %v336 = vadd.f32 0.0, %v335
    %v337 = vpop.f32.mrf.mxu0
    %v338 = vpop.f32.mrf.mxu0
    %v339 = vpop.f32.mrf.mxu0
    %340 = vdwg.mxu0
    %v341 = vld [vmem:[%s5] sm:$0x1]
    %v342 = vld [vmem:[%s6] sm:$0x1]
    %v343 = vrot.slane %v336, 4
    %v344 = vadd.f32 %v336, %v343
    %v345 = vrot.slane %v344, 2
    %v346 = vadd.f32 %v344, %v345
    %v347 = vrot.slane %v346, 1
    %v348 = vadd.f32 %v346, %v347
    %v349 = vmul.f32 %v348, 0.125
    %v350 = vsub.f32 %v336, %v349
    %v351 = vmul.f32 %v350, %v350
    %v352 = vrot.slane %v351, 4
    %v353 = vadd.f32 %v351, %v352
    %v354 = vrot.slane %v353, 2
    %v355 = vadd.f32 %v353, %v354
    %v356 = vrot.slane %v355, 1
    %v357 = vadd.f32 %v355, %v356
    %v358 = vmul.f32 %v357, 0.125
    %v359 = vadd.f32 %v358, 1e-05
    %v360 = vrsqrt.pop %v359
    %v361 = vmul.f32 %v341, %v360
    %v362 = vmul.f32 %v349, %v361
    %v363 = vsub.f32 %v342, %v362
    %v365 = vlaneseq
    %v366 = vshrl.u32 %v365, 7
    %v367 = vsub.s32 0, %v366
    %v368 = vrot.slane %v361, %v367
    %v370 = vmul.f32 %v336, %v368
    %v372 = vlaneseq
    %v373 = vshrl.u32 %v372, 7
    %v374 = vsub.s32 0, %v373
    %v375 = vrot.slane %v363, %v374
    %v377 = vadd.f32 %v370, %v375
    %v378 = vxor.u32 %v377, 2147483648
    %v379 = vmul.f32 %v378, 1.442695
    %v380 = vpow.pop %v379
    %v381 = vadd.f32 %v380, 1.0
    %v382 = vrcp.pop %v381
    %v383 = vmul.f32 1.0, %v382
    %v384 = vmul.f32 %v377, %v383
    %v385 = vpack.c.bf16 %v384, %v384
    %v386 = vld [vmem:[#allocation8] sm:$0xf]
    %v387 = vld [vmem:[#allocation8 + $0x4] sm:$0xf]
    %v388 = vld [vmem:[#allocation8 + $0x8] sm:$0xf]
    %v389 = vld [vmem:[#allocation8 + $0xc] sm:$0xf]
    %v390 = vld [vmem:[#allocation8 + $0x10] sm:$0xf]
    %v391 = vld [vmem:[#allocation8 + $0x14] sm:$0xf]
    %v392 = vld [vmem:[#allocation8 + $0x18] sm:$0xf]
    %v393 = vld [vmem:[#allocation8 + $0x1c] sm:$0xf]
    %v394 = vld [vmem:[#allocation8 + $0x20] sm:$0xf]
    %v395 = vld [vmem:[#allocation8 + $0x24] sm:$0xf]
    %v396 = vld [vmem:[#allocation8 + $0x28] sm:$0xf]
    %v397 = vld [vmem:[#allocation8 + $0x2c] sm:$0xf]
    %v398 = vld [vmem:[#allocation8 + $0x30] sm:$0xf]
    %v399 = vld [vmem:[#allocation8 + $0x34] sm:$0xf]
    %v400 = vld [vmem:[#allocation8 + $0x38] sm:$0xf]
    %v401 = vld [vmem:[#allocation8 + $0x3c] sm:$0xf]
    %v402 = vld [vmem:[%s8] sm:$0x1]
    %v404 = vlaneseq
    %v405 = vshrl.u32 %v404, 7
    %v406 = vsub.s32 0, %v405
    %v407 = vrot.slane %v402, %v406
    %v425 = vunpack.c.l.b16 %v386
    %v426 = vunpack.c.l.b16 %v387
    %v427 = vunpack.c.l.b16 %v388
    %v428 = vunpack.c.l.b16 %v389
    %v429 = vunpack.c.l.b16 %v390
    %v430 = vunpack.c.l.b16 %v391
    %v431 = vunpack.c.l.b16 %v392
    %v432 = vunpack.c.l.b16 %v393
    %v433 = vunpack.c.l.b16 %v394
    %v434 = vunpack.c.l.b16 %v395
    %v435 = vunpack.c.l.b16 %v396
    %v436 = vunpack.c.l.b16 %v397
    %v437 = vunpack.c.l.b16 %v398
    %v438 = vunpack.c.l.b16 %v399
    %v439 = vunpack.c.l.b16 %v400
    %v440 = vunpack.c.l.b16 %v401
    %v441 = vpack.c.b16 %v426, %v425
    %v442 = vpack.c.b16 %v428, %v427
    %v443 = vpack.c.b16 %v430, %v429
    %v444 = vpack.c.b16 %v432, %v431
    %v445 = vpack.c.b16 %v434, %v433
    %v446 = vpack.c.b16 %v436, %v435
    %v447 = vpack.c.b16 %v438, %v437
    %v448 = vpack.c.b16 %v440, %v439
    %457 = vmatprep.subr.bf16.mxu0 0
    %458 = vmatpush1.bf16.msra.mxu0 %v448
    %459 = vmatprep.subr.bf16.mxu0 0
    %460 = vmatpush1.bf16.msra.mxu0 %v447
    %461 = vmatprep.subr.bf16.mxu0 0
    %462 = vmatpush1.bf16.msra.mxu0 %v446
    %463 = vmatprep.subr.bf16.mxu0 0
    %464 = vmatpush1.bf16.msra.mxu0 %v445
    %465 = vmatprep.subr.bf16.mxu0 0
    %466 = vmatpush1.bf16.msra.mxu0 %v444
    %467 = vmatprep.subr.bf16.mxu0 0
    %468 = vmatpush1.bf16.msra.mxu0 %v443
    %469 = vmatprep.subr.bf16.mxu0 0
    %470 = vmatpush1.bf16.msra.mxu0 %v442
    %471 = vmatprep.subr.bf16.mxu0 0
    %472 = vmatpush1.bf16.msra.mxu0 %v441
    %473 = vmatprep.subr.bf16.mxu0 0
    %474 = vmatpush2.bf16.msra.mxu0 0
    %475 = vmatprep.subr.bf16.mxu0 0
    %476 = vmatpush2.bf16.msra.mxu0 0
    %477 = vmatprep.subr.bf16.mxu0 0
    %478 = vmatpush2.bf16.msra.mxu0 0
    %479 = vmatprep.subr.bf16.mxu0 0
    %480 = vmatpush2.bf16.msra.mxu0 0
    %481 = vmatprep.subr.bf16.mxu0 0
    %482 = vmatpush2.bf16.msra.mxu0 0
    %483 = vmatprep.subr.bf16.mxu0 0
    %484 = vmatpush2.bf16.msra.mxu0 0
    %485 = vmatprep.subr.bf16.mxu0 0
    %486 = vmatpush2.bf16.msra.mxu0 0
    %487 = vmatprep.subr.bf16.mxu0 0
    %488 = vmatpush2.bf16.msra.mxu0 0
    %489 = vmatprep.mubr.bf16.mxu0 0
    %490 = vmatmul.mubr.bf16.gmra.mxu0 %v385
    %v491 = vpop.f32.mrf.mxu0
    %v492 = vadd.f32 %v407, %v491
    %v493 = vpop.f32.mrf.mxu0
    %v494 = vpop.f32.mrf.mxu0
    %v495 = vpop.f32.mrf.mxu0
    %496 = vdwg.mxu0
    %497 = vst [vmem:[#allocation10] sm:$0xff] %v492
    // Predicated region
    $region54: #{tpu_custom_call.1} parent=1 // pred_check
      _
    $region55: #{tpu_custom_call.1} parent=1 // pred_check_branch
      %499 = sbr.rel (0) target = $region57
    $region56: #{tpu_custom_call.1} parent=1 // pred_region
      %s501 = ssub.s32 128, 128
      %502 = vsyncadd [#allocation4], %s501
      %s504 = sshll.u32 [#allocation10], 4
      %s505 = int_to_ptr.vmem [resolvable:$true] %s504
      %507 = dma.vmem_to_hbm [thread:$0]  %s505, 128, %s9, [#allocation4]
    $region57: #{tpu_custom_call.1} parent=1 // pred_fallthru
      _
    // Predicated region
    $region58: #{tpu_custom_call.1} parent=1 // pred_check
      _
    $region59: #{tpu_custom_call.1} parent=1 // pred_check_branch
      %509 = sbr.rel (0) target = $region61
    $region60: #{tpu_custom_call.1} parent=1 // pred_region
      %510 = dma.done [#allocation4], 128
    $region61: #{tpu_custom_call.1} parent=1 // pred_fallthru
      _
    %511 = vsyncpa [#allocation3], 1
    %512 = vsyncpa [#allocation6], 1
    %513 = vsyncpa [#allocation9], 1
    %514 = vsyncpa [#allocation4], 1

</llo_original>
